<compile_context>
chip_gen: v7x
topology: tpu7x:2x2x1
jax: 0.10.0
libtpu: 0.0.40
codegen_flags: <defaults>
</compile_context>

<pallas_src>
import functools

import jax
import jax.numpy as jnp
from jax.experimental import pallas as pl
from jax.experimental.pallas import tpu as pltpu


def _round_up(x, m):
    return ((x + m - 1) // m) * m


def _vmem_capacity_bytes():
    try:
        return int(pltpu.get_tpu_info().vmem_capacity_bytes)
    except Exception:
        return 64 * 1024 * 1024          # conservative: safe on every generation


def _vpu_has_native_bf16():
    # v6e / v7x VPUs have bf16 VALUs; v5e and older do not.
    try:
        kind = jax.devices()[0].device_kind.lower()
    except Exception:
        return False
    return not any(v in kind for v in ("v2", "v3", "v4", "v5"))


def _fold_to_vreg(x):
    """Reduce a 2-D f32 array to an (8, 128) tile whose element-sum equals sum(x).

    Fast path uses only cross-vreg VPU adds (no XLU lane/sublane collapse) when the
    shape is (8k, 128m); otherwise falls back to a full reduction placed at [0, 0].
    """
    rows, cols = x.shape
    if rows % 8 == 0:
        x = x.reshape(rows // 8, 8, cols).sum(axis=0)            # (8, cols): vreg adds
        if cols % 128 == 0:
            return x.reshape(8, cols // 128, 128).sum(axis=1)    # (8, 128): vreg adds
    s = jnp.sum(x)                                               # rare/tiny fallback
    r = jax.lax.broadcasted_iota(jnp.int32, (8, 128), 0)
    c = jax.lax.broadcasted_iota(jnp.int32, (8, 128), 1)
    return jnp.where((r == 0) & (c == 0), s, 0.0)


def _custom_loss_kernel(mn_ref, sd_ref, out_ref, tgt_ref, part_ref,
                        *, batch, block_b, needs_mask, bf16_math):
    def compute(valid):
        if bf16_math:
            diff = out_ref[...] - tgt_ref[...]                   # bf16 VPU
            sq = (diff * diff).astype(jnp.float32)
            mn_b = mn_ref[...]
            mn_sq = (mn_b * mn_b).astype(jnp.float32)
        else:
            o = out_ref[...].astype(jnp.float32)
            t = tgt_ref[...].astype(jnp.float32)
            diff = o - t
            sq = diff * diff
            mn_f = mn_ref[...].astype(jnp.float32)
            mn_sq = mn_f * mn_f
        sd_f = sd_ref[...].astype(jnp.float32)
        kl = mn_sq + jnp.exp(sd_f) - sd_f - 1.0                  # = -(1 + sd - mn^2 - e^sd)
        if valid is not None:                                    # mask BEFORE reducing
            sq = jnp.where(valid, sq, 0.0)
            kl = jnp.where(valid, kl, 0.0)
        return _fold_to_vreg(sq), 0.5 * _fold_to_vreg(kl)

    def store(dec_tile, lat_tile):
        # One lane-dense output block per step: decoded partial in rows 0:8,
        # latent partial in rows 8:16  ->  single output DMA per grid step.
        part_ref[0, 0:8, :] = dec_tile
        part_ref[0, 8:16, :] = lat_tile

    if not needs_mask:
        store(*compute(None))
    else:
        i = pl.program_id(0)
        last = pl.num_programs(0) - 1

        @pl.when(i != last)                                      # hot path: no mask
        def _():
            store(*compute(None))

        @pl.when(i == last)                                      # tail tile: mask rows
        def _():
            row = jax.lax.broadcasted_iota(jnp.int32, (block_b, 1), 0)
            valid = (i * block_b + row) < batch
            store(*compute(valid))


def custom_loss(mn, sd, outputs, targets, alpha, *, block_b=None, vmem_budget_bytes=None):
    """Pallas equivalent of CustomLoss.forward. Returns a scalar f32."""
    batch, latent_dim = mn.shape
    out_batch, feat_dim = outputs.shape
    assert out_batch == batch and sd.shape == mn.shape and targets.shape == outputs.shape

    isz = {n: jnp.dtype(a.dtype).itemsize
           for n, a in (("mn", mn), ("sd", sd), ("out", outputs), ("tgt", targets))}
    sublane = 32 // min(isz.values())          # rows/vreg: 8 f32, 16 bf16, 32 int8/fp8

    cap = _vmem_capacity_bytes()
    if vmem_budget_bytes is None:
        vmem_budget_bytes = cap // 2           # ~64 MiB v5e/v6e, ~32 MiB v7x
    vmem_limit_bytes = (cap * 3) // 4          # scoped limit with headroom

    if block_b is None:
        # Lane-padded (multiple-of-128) footprints: double-buffered native inputs
        # plus the f32 intermediate working set the kernel materializes.
        lat_pad = _round_up(latent_dim, 128)
        feat_pad = _round_up(feat_dim, 128)
        per_row = (2 * (feat_pad * (isz["out"] + isz["tgt"])
                        + lat_pad * (isz["mn"] + isz["sd"]))
                   + 2 * (feat_pad + lat_pad) * 4)
        block_b = max(sublane, vmem_budget_bytes // per_row)

    if block_b >= batch:
        # Whole batch fits one tile.  Still split into two sublane-aligned blocks
        # (when possible) so dimension_semantics=("parallel",) can shard the grid
        # across v7x's 2 TensorCores.  Single-TC parts are unaffected.
        if batch > sublane:
            block_b = _round_up(-(-batch // 2), sublane)
        else:
            block_b = batch                    # block == full dim (any size allowed)
    else:
        block_b = max(sublane, (block_b // sublane) * sublane)

    num_blocks = int(pl.cdiv(batch, block_b))
    needs_mask = (batch % block_b) != 0
    bf16_math = (_vpu_has_native_bf16()
                 and all(a.dtype == jnp.bfloat16 for a in (mn, outputs, targets)))

    kernel = functools.partial(_custom_loss_kernel, batch=batch, block_b=block_b,
                               needs_mask=needs_mask, bf16_math=bf16_math)

    partials = pl.pallas_call(
        kernel,
        out_shape=jax.ShapeDtypeStruct((num_blocks, 16, 128), jnp.float32),
        grid_spec=pltpu.PrefetchScalarGridSpec(
            num_scalar_prefetch=0,
            grid=(num_blocks,),
            in_specs=[
                pl.BlockSpec((block_b, latent_dim), lambda i: (i, 0)),   # mn
                pl.BlockSpec((block_b, latent_dim), lambda i: (i, 0)),   # sd
                pl.BlockSpec((block_b, feat_dim), lambda i: (i, 0)),     # outputs
                pl.BlockSpec((block_b, feat_dim), lambda i: (i, 0)),     # targets
            ],
            out_specs=pl.BlockSpec((1, 16, 128), lambda i: (i, 0, 0)),   # fused partials
        ),
        compiler_params=pltpu.CompilerParams(
            dimension_semantics=("parallel",),
            vmem_limit_bytes=vmem_limit_bytes),
    )(mn, sd, outputs, targets)

    alpha_f = jnp.asarray(alpha, dtype=jnp.float32)
    dec_total = jnp.sum(partials[:, 0:8, :])
    lat_total = jnp.sum(partials[:, 8:16, :])
    return ((1.0 - alpha_f) * dec_total + alpha_f * lat_total) / batch


def _reference_loss(mn, sd, outputs, targets, alpha):
    decoded = jnp.sum((outputs - targets) ** 2, axis=1)
    latent = -0.5 * jnp.sum(1.0 + sd - jnp.square(mn) - jnp.exp(sd), axis=1)
    return jnp.mean((1.0 - alpha) * decoded + alpha * latent)


if __name__ == "__main__":
    key = jax.random.PRNGKey(0)
    k1, k2, k3, k4 = jax.random.split(key, 4)

    batch = 12            # deliberately NOT a tile multiple -> exercises the masked tail
    latent_dim = 32
    feature_dim = 256
    alpha = 0.3

    mn = jax.random.normal(k1, (batch, latent_dim), dtype=jnp.float32)
    sd = jax.random.normal(k2, (batch, latent_dim), dtype=jnp.float32) * 0.1
    outputs = jax.random.normal(k3, (batch, feature_dim), dtype=jnp.float32)
    targets = jax.random.normal(k4, (batch, feature_dim), dtype=jnp.float32)

    ref = _reference_loss(mn, sd, outputs, targets, alpha)

    # Forced small tile: grid=(2,), last tile masked via the pl.when tail path.
    loss = custom_loss(mn, sd, outputs, targets, alpha, block_b=8)
    jax.block_until_ready(loss)
    assert jnp.allclose(loss, ref, rtol=1e-5, atol=1e-5), (loss, ref)

    # Auto tile selection (budget-sized, split for megacore).
    loss_auto = custom_loss(mn, sd, outputs, targets, alpha)
    jax.block_until_ready(loss_auto)
    assert jnp.allclose(loss_auto, ref, rtol=1e-5, atol=1e-5), (loss_auto, ref)

    # bf16 inputs: native-dtype HBM reads; bf16 VPU math on v6e/v7x, f32 upcast on v5e.
    mn_b, sd_b = mn.astype(jnp.bfloat16), sd.astype(jnp.bfloat16)
    out_b, tgt_b = outputs.astype(jnp.bfloat16), targets.astype(jnp.bfloat16)
    loss_bf16 = custom_loss(mn_b, sd_b, out_b, tgt_b, alpha)
    jax.block_until_ready(loss_bf16)
    ref_bf16 = _reference_loss(mn_b.astype(jnp.float32), sd_b.astype(jnp.float32),
                               out_b.astype(jnp.float32), tgt_b.astype(jnp.float32), alpha)
    assert jnp.allclose(loss_bf16, ref_bf16, rtol=2e-2, atol=2e-2), (loss_bf16, ref_bf16)

    print("KERNEL_OK")
</pallas_src>

<mosaic_0001>
module attributes {stable_mosaic.version = 11 : i64} {
  func.func @_custom_loss_kernel(%arg0: i32, %arg1: memref<8x32xf32, #tpu.memory_space<vmem>>, %arg2: memref<8x32xf32, #tpu.memory_space<vmem>>, %arg3: memref<8x256xf32, #tpu.memory_space<vmem>>, %arg4: memref<8x256xf32, #tpu.memory_space<vmem>>, %arg5: memref<1x16x128xf32, #tpu.memory_space<vmem>>) attributes {dimension_semantics = [#tpu.dimension_semantics<parallel>], iteration_bounds = array<i64: 2>, scalar_prefetch = 0 : i64, scratch_operands = 0 : i64, tpu.core_type = #tpu.core_type<tc>, window_params = [{transform_indices = @transform_0, window_bounds = array<i64: 8, 32>}, {transform_indices = @transform_1, window_bounds = array<i64: 8, 32>}, {transform_indices = @transform_2, window_bounds = array<i64: 8, 256>}, {transform_indices = @transform_3, window_bounds = array<i64: 8, 256>}, {transform_indices = @transform_4, window_bounds = array<i64: 1, 16, 128>}]} {
    %c1_i32 = arith.constant 1 : i32
    %0 = arith.cmpi ne, %arg0, %c1_i32 : i32
    %1 = arith.extui %0 : i1 to i32
    %c0_i32 = arith.constant 0 : i32
    %2 = arith.cmpi ne, %1, %c0_i32 : i32
    scf.if %2 {
      %c0 = arith.constant 0 : index
      %c0_2 = arith.constant 0 : index
      %6 = vector.load %arg3[%c0, %c0_2] : memref<8x256xf32, #tpu.memory_space<vmem>>, vector<8x256xf32>
      %c0_3 = arith.constant 0 : index
      %c0_4 = arith.constant 0 : index
      %7 = vector.load %arg4[%c0_3, %c0_4] : memref<8x256xf32, #tpu.memory_space<vmem>>, vector<8x256xf32>
      %8 = arith.subf %6, %7 : vector<8x256xf32>
      %9 = arith.mulf %8, %8 : vector<8x256xf32>
      %c0_5 = arith.constant 0 : index
      %c0_6 = arith.constant 0 : index
      %10 = vector.load %arg1[%c0_5, %c0_6] : memref<8x32xf32, #tpu.memory_space<vmem>>, vector<8x32xf32>
      %11 = arith.mulf %10, %10 : vector<8x32xf32>
      %c0_7 = arith.constant 0 : index
      %c0_8 = arith.constant 0 : index
      %12 = vector.load %arg2[%c0_7, %c0_8] : memref<8x32xf32, #tpu.memory_space<vmem>>, vector<8x32xf32>
      %13 = math.exp %12 : vector<8x32xf32>
      %14 = arith.addf %11, %13 : vector<8x32xf32>
      %15 = arith.subf %14, %12 : vector<8x32xf32>
      %cst = arith.constant 1.000000e+00 : f32
      %16 = vector.broadcast %cst : f32 to vector<8x32xf32>
      %17 = arith.subf %15, %16 : vector<8x32xf32>
      %18 = vector.shape_cast %9 : vector<8x256xf32> to vector<1x8x256xf32>
      %cst_9 = arith.constant dense<0.000000e+00> : vector<8x256xf32>
      %19 = vector.multi_reduction <add>, %18, %cst_9 [0] : vector<1x8x256xf32> to vector<8x256xf32>
      %20 = vector.shape_cast %19 : vector<8x256xf32> to vector<8x2x128xf32>
      %cst_10 = arith.constant dense<0.000000e+00> : vector<8x128xf32>
      %21 = vector.multi_reduction <add>, %20, %cst_10 [1] : vector<8x2x128xf32> to vector<8x128xf32>
      %22 = vector.shape_cast %17 : vector<8x32xf32> to vector<1x8x32xf32>
      %cst_11 = arith.constant dense<0.000000e+00> : vector<8x32xf32>
      %23 = vector.multi_reduction <add>, %22, %cst_11 [0] : vector<1x8x32xf32> to vector<8x32xf32>
      %24 = vector.shape_cast %23 : vector<8x32xf32> to vector<1x8x32xf32>
      %cst_12 = arith.constant dense<0.000000e+00> : vector<1xf32>
      %25 = vector.multi_reduction <add>, %24, %cst_12 [1, 2] : vector<1x8x32xf32> to vector<1xf32>
      %26 = vector.shape_cast %25 : vector<1xf32> to vector<1x1x1xf32>
      %27 = vector.extract %26[0, 0, 0] : f32 from vector<1x1x1xf32>
      %28 = tpu.iota {dimensions = array<i32: 0>} : vector<8x128xi32>
      %29 = tpu.iota {dimensions = array<i32: 1>} : vector<8x128xi32>
      %c0_i32_13 = arith.constant 0 : i32
      %30 = vector.broadcast %c0_i32_13 : i32 to vector<8x128xi32>
      %31 = arith.cmpi eq, %28, %30 : vector<8x128xi32>
      %c0_i32_14 = arith.constant 0 : i32
      %32 = vector.broadcast %c0_i32_14 : i32 to vector<8x128xi32>
      %33 = arith.cmpi eq, %29, %32 : vector<8x128xi32>
      %34 = arith.andi %31, %33 : vector<8x128xi1>
      %cst_15 = arith.constant 0.000000e+00 : f32
      %35 = vector.broadcast %27 : f32 to vector<8x128xf32>
      %36 = vector.broadcast %cst_15 : f32 to vector<8x128xf32>
      %37 = arith.select %34, %35, %36 : vector<8x128xi1>, vector<8x128xf32>
      %cst_16 = arith.constant 5.000000e-01 : f32
      %38 = vector.broadcast %cst_16 : f32 to vector<8x128xf32>
      %39 = arith.mulf %38, %37 : vector<8x128xf32>
      %c0_17 = arith.constant 0 : index
      %c0_18 = arith.constant 0 : index
      %c0_19 = arith.constant 0 : index
      %40 = vector.load %arg5[%c0_17, %c0_18, %c0_19] : memref<1x16x128xf32, #tpu.memory_space<vmem>>, vector<1x8x128xf32>
      %41 = vector.shape_cast %40 : vector<1x8x128xf32> to vector<8x128xf32>
      %42 = vector.shape_cast %21 : vector<8x128xf32> to vector<1x8x128xf32>
      tpu.vector_store %arg5[%c0_17, %c0_18, %c0_19], %42 {strides = array<i32>} : memref<1x16x128xf32, #tpu.memory_space<vmem>>, vector<1x8x128xf32>,
      %c0_20 = arith.constant 0 : index
      %c8 = arith.constant 8 : index
      %c0_21 = arith.constant 0 : index
      %43 = vector.load %arg5[%c0_20, %c8, %c0_21] : memref<1x16x128xf32, #tpu.memory_space<vmem>>, vector<1x8x128xf32>
      %44 = vector.shape_cast %43 : vector<1x8x128xf32> to vector<8x128xf32>
      %45 = vector.shape_cast %39 : vector<8x128xf32> to vector<1x8x128xf32>
      tpu.vector_store %arg5[%c0_20, %c8, %c0_21], %45 {strides = array<i32>} : memref<1x16x128xf32, #tpu.memory_space<vmem>>, vector<1x8x128xf32>,
    } else {
    }
    %c1_i32_0 = arith.constant 1 : i32
    %3 = arith.cmpi eq, %arg0, %c1_i32_0 : i32
    %4 = arith.extui %3 : i1 to i32
    %c0_i32_1 = arith.constant 0 : i32
    %5 = arith.cmpi ne, %4, %c0_i32_1 : i32
    scf.if %5 {
      %6 = tpu.iota {dimensions = array<i32: 0>} : vector<8x1xi32>
      %c8_i32 = arith.constant 8 : i32
      %7 = arith.muli %arg0, %c8_i32 : i32
      %8 = vector.broadcast %7 : i32 to vector<8x1xi32>
      %9 = arith.addi %8, %6 : vector<8x1xi32>
      %c12_i32 = arith.constant 12 : i32
      %10 = vector.broadcast %c12_i32 : i32 to vector<8x1xi32>
      %11 = arith.cmpi slt, %9, %10 : vector<8x1xi32>
      %c0 = arith.constant 0 : index
      %c0_2 = arith.constant 0 : index
      %12 = vector.load %arg3[%c0, %c0_2] : memref<8x256xf32, #tpu.memory_space<vmem>>, vector<8x256xf32>
      %c0_3 = arith.constant 0 : index
      %c0_4 = arith.constant 0 : index
      %13 = vector.load %arg4[%c0_3, %c0_4] : memref<8x256xf32, #tpu.memory_space<vmem>>, vector<8x256xf32>
      %14 = arith.subf %12, %13 : vector<8x256xf32>
      %15 = arith.mulf %14, %14 : vector<8x256xf32>
      %c0_5 = arith.constant 0 : index
      %c0_6 = arith.constant 0 : index
      %16 = vector.load %arg1[%c0_5, %c0_6] : memref<8x32xf32, #tpu.memory_space<vmem>>, vector<8x32xf32>
      %17 = arith.mulf %16, %16 : vector<8x32xf32>
      %c0_7 = arith.constant 0 : index
      %c0_8 = arith.constant 0 : index
      %18 = vector.load %arg2[%c0_7, %c0_8] : memref<8x32xf32, #tpu.memory_space<vmem>>, vector<8x32xf32>
      %19 = math.exp %18 : vector<8x32xf32>
      %20 = arith.addf %17, %19 : vector<8x32xf32>
      %21 = arith.subf %20, %18 : vector<8x32xf32>
      %cst = arith.constant 1.000000e+00 : f32
      %22 = vector.broadcast %cst : f32 to vector<8x32xf32>
      %23 = arith.subf %21, %22 : vector<8x32xf32>
      %cst_9 = arith.constant 0.000000e+00 : f32
      %24 = vector.shape_cast %11 : vector<8x1xi1> to vector<8x1xi1>
      %25 = vector.broadcast %24 : vector<8x1xi1> to vector<8x256xi1>
      %26 = vector.broadcast %cst_9 : f32 to vector<8x256xf32>
      %27 = arith.select %25, %15, %26 : vector<8x256xi1>, vector<8x256xf32>
      %cst_10 = arith.constant 0.000000e+00 : f32
      %28 = vector.shape_cast %11 : vector<8x1xi1> to vector<8x1xi1>
      %29 = vector.broadcast %28 : vector<8x1xi1> to vector<8x32xi1>
      %30 = vector.broadcast %cst_10 : f32 to vector<8x32xf32>
      %31 = arith.select %29, %23, %30 : vector<8x32xi1>, vector<8x32xf32>
      %32 = vector.shape_cast %27 : vector<8x256xf32> to vector<1x8x256xf32>
      %cst_11 = arith.constant dense<0.000000e+00> : vector<8x256xf32>
      %33 = vector.multi_reduction <add>, %32, %cst_11 [0] : vector<1x8x256xf32> to vector<8x256xf32>
      %34 = vector.shape_cast %33 : vector<8x256xf32> to vector<8x2x128xf32>
      %cst_12 = arith.constant dense<0.000000e+00> : vector<8x128xf32>
      %35 = vector.multi_reduction <add>, %34, %cst_12 [1] : vector<8x2x128xf32> to vector<8x128xf32>
      %36 = vector.shape_cast %31 : vector<8x32xf32> to vector<1x8x32xf32>
      %cst_13 = arith.constant dense<0.000000e+00> : vector<8x32xf32>
      %37 = vector.multi_reduction <add>, %36, %cst_13 [0] : vector<1x8x32xf32> to vector<8x32xf32>
      %38 = vector.shape_cast %37 : vector<8x32xf32> to vector<1x8x32xf32>
      %cst_14 = arith.constant dense<0.000000e+00> : vector<1xf32>
      %39 = vector.multi_reduction <add>, %38, %cst_14 [1, 2] : vector<1x8x32xf32> to vector<1xf32>
      %40 = vector.shape_cast %39 : vector<1xf32> to vector<1x1x1xf32>
      %41 = vector.extract %40[0, 0, 0] : f32 from vector<1x1x1xf32>
      %42 = tpu.iota {dimensions = array<i32: 0>} : vector<8x128xi32>
      %43 = tpu.iota {dimensions = array<i32: 1>} : vector<8x128xi32>
      %c0_i32_15 = arith.constant 0 : i32
      %44 = vector.broadcast %c0_i32_15 : i32 to vector<8x128xi32>
      %45 = arith.cmpi eq, %42, %44 : vector<8x128xi32>
      %c0_i32_16 = arith.constant 0 : i32
      %46 = vector.broadcast %c0_i32_16 : i32 to vector<8x128xi32>
      %47 = arith.cmpi eq, %43, %46 : vector<8x128xi32>
      %48 = arith.andi %45, %47 : vector<8x128xi1>
      %cst_17 = arith.constant 0.000000e+00 : f32
      %49 = vector.broadcast %41 : f32 to vector<8x128xf32>
      %50 = vector.broadcast %cst_17 : f32 to vector<8x128xf32>
      %51 = arith.select %48, %49, %50 : vector<8x128xi1>, vector<8x128xf32>
      %cst_18 = arith.constant 5.000000e-01 : f32
      %52 = vector.broadcast %cst_18 : f32 to vector<8x128xf32>
      %53 = arith.mulf %52, %51 : vector<8x128xf32>
      %c0_19 = arith.constant 0 : index
      %c0_20 = arith.constant 0 : index
      %c0_21 = arith.constant 0 : index
      %54 = vector.load %arg5[%c0_19, %c0_20, %c0_21] : memref<1x16x128xf32, #tpu.memory_space<vmem>>, vector<1x8x128xf32>
      %55 = vector.shape_cast %54 : vector<1x8x128xf32> to vector<8x128xf32>
      %56 = vector.shape_cast %35 : vector<8x128xf32> to vector<1x8x128xf32>
      tpu.vector_store %arg5[%c0_19, %c0_20, %c0_21], %56 {strides = array<i32>} : memref<1x16x128xf32, #tpu.memory_space<vmem>>, vector<1x8x128xf32>,
      %c0_22 = arith.constant 0 : index
      %c8 = arith.constant 8 : index
      %c0_23 = arith.constant 0 : index
      %57 = vector.load %arg5[%c0_22, %c8, %c0_23] : memref<1x16x128xf32, #tpu.memory_space<vmem>>, vector<1x8x128xf32>
      %58 = vector.shape_cast %57 : vector<1x8x128xf32> to vector<8x128xf32>
      %59 = vector.shape_cast %53 : vector<8x128xf32> to vector<1x8x128xf32>
      tpu.vector_store %arg5[%c0_22, %c8, %c0_23], %59 {strides = array<i32>} : memref<1x16x128xf32, #tpu.memory_space<vmem>>, vector<1x8x128xf32>,
    } else {
    }
    return
  }
  func.func @transform_0(%arg0: i32) -> (i32, i32) {
    %c0_i32 = arith.constant 0 : i32
    %c0_i32_0 = arith.constant 0 : i32
    return %arg0, %c0_i32 : i32, i32
  }
  func.func @transform_1(%arg0: i32) -> (i32, i32) {
    %c0_i32 = arith.constant 0 : i32
    %c0_i32_0 = arith.constant 0 : i32
    return %arg0, %c0_i32 : i32, i32
  }
  func.func @transform_2(%arg0: i32) -> (i32, i32) {
    %c0_i32 = arith.constant 0 : i32
    %c0_i32_0 = arith.constant 0 : i32
    return %arg0, %c0_i32 : i32, i32
  }
  func.func @transform_3(%arg0: i32) -> (i32, i32) {
    %c0_i32 = arith.constant 0 : i32
    %c0_i32_0 = arith.constant 0 : i32
    return %arg0, %c0_i32 : i32, i32
  }
  func.func @transform_4(%arg0: i32) -> (i32, i32, i32) {
    %c0_i32 = arith.constant 0 : i32
    %c0_i32_0 = arith.constant 0 : i32
    %c0_i32_1 = arith.constant 0 : i32
    return %arg0, %c0_i32, %c0_i32_0 : i32, i32, i32
  }
}

</mosaic_0001>

<llo_original>
// kernel: tpu_custom_call.1
$region0: #{tpu_custom_call.1}
  #allocation0 [shape = 'u32[]', space=smem, size = 0x4, offset = 0x4, fixed_abs, tag = 'smem constant byte address 0x4 - core index']
  #allocation1 [shape = 'u32[144,128]{1,0:T(1,128)}', space=vmem, size = 0x12000, scoped, tag = 'internal scratch']
  %s0 = inlined_call_operand.hbm [shape: f32[12,32], index: 0, kind: input, shape index: {}]
  %s1 = inlined_call_operand.hbm [shape: f32[12,32], index: 1, kind: input, shape index: {}]
  %s2 = inlined_call_operand.hbm [shape: f32[12,256], index: 2, kind: input, shape index: {}]
  %s3 = inlined_call_operand.hbm [shape: f32[12,256], index: 3, kind: input, shape index: {}]
  %s4 = inlined_call_operand.hbm [shape: f32[2,16,128], index: 4, kind: output, shape index: {}]
  %s5 = sld [smem:[#allocation0]]
  $region73: #{tpu_custom_call.1} parent=0
    _
  %s7 = ssub.s32 1, %s5
  %s8 = scalar_select 0, %s7, %s5
  $region1: #{tpu_custom_call.1} parent=0
    #allocation2 [shape = 'u8[8192]{0}', space=vmem, size = 0x2000, scoped, tag = 'input window, operand 0']
    #allocation3 [shape = 's32[2]{0}', space=sflag, size = 0x8, scoped, tag = 'scoped memory for tpu_custom_call.1']
    #allocation4 [shape = 's32[2]{0}', space=sflag, size = 0x8, scoped, tag = 'scoped memory for tpu_custom_call.1']
    #allocation5 [shape = 'u8[8192]{0}', space=vmem, size = 0x2000, scoped, tag = 'input window, operand 1']
    #allocation6 [shape = 's32[2]{0}', space=sflag, size = 0x8, scoped, tag = 'scoped memory for tpu_custom_call.1']
    #allocation7 [shape = 'u8[16384]{0}', space=vmem, size = 0x4000, scoped, tag = 'input window, operand 2']
    #allocation8 [shape = 'u8[16384]{0}', space=vmem, size = 0x4000, scoped, tag = 'input window, operand 3']
    #allocation9 [shape = 's32[2]{0}', space=sflag, size = 0x8, scoped, tag = 'scoped memory for tpu_custom_call.1']
    #allocation10 [shape = 'u8[16384]{0}', space=vmem, size = 0x4000, scoped, tag = 'output window, operand 0']
    %9 = vsyncpa [#allocation3], 0
    %s10 = scalar_lea.sflag [#allocation3], 1
    %11 = vsyncpa %s10, 0
    %12 = vsyncpa [#allocation6], 0
    %s13 = scalar_lea.sflag [#allocation6], 1
    %14 = vsyncpa %s13, 0
    %15 = vsyncpa [#allocation9], 0
    %s16 = scalar_lea.sflag [#allocation9], 1
    %17 = vsyncpa %s16, 0
    %18 = vsyncpa [#allocation4], 0
    %s19 = scalar_lea.sflag [#allocation4], 1
    %20 = vsyncpa %s19, 0
    loop: start=0, step=1, limit=4
    $region2: #{tpu_custom_call.1} parent=1 // loop_pre_header
      _
    $region3: #{tpu_custom_call.1} parent=1 // loop_header
      %s22 = sphi 0, %s26
      %p23 = scmp.ge.s32.totalorder %s22, 4
      %s32 = sphi 0, %s34
      %s35 = sphi 0, %s32
      %s36 = sphi 0, %s35
      %s52 = sphi 0, %s36
      %s58 = sphi 0, %s60
      %s61 = sphi 0, %s58
      %s62 = sphi 0, %s61
      %s78 = sphi 0, %s62
      %s84 = sphi 0, %s86
      %s87 = sphi 0, %s84
      %s88 = sphi 0, %s87
      %s104 = sphi 0, %s88
      %s110 = sphi 0, %s112
      %s113 = sphi 0, %s110
      %s114 = sphi 0, %s113
      %s130 = sphi 0, %s114
      %s136 = sphi 0, %s138
      %s139 = sphi 0, %s136
      %s140 = sphi 0, %s139
      %s156 = sphi 0, %s140
    $region4: #{tpu_custom_call.1} parent=1 // loop_header_branch
      %25 = sbr.rel (%p23) target = $region8
    $region5: #{tpu_custom_call.1} parent=1 // loop_body
      %s27 = ssub.s32 %s22, 1
      %s28 = ssub.s32 %s22, 2
      %s29 = sadd.s32 %s22, 1
      %s30 = ssub.s32 %s22, %s29
      %p31 = scmp.eq.s32.totalorder %s30, 0
      %s33 = sadd.s32 %s32, 1
      %s34 = scalar_select %p31, %s32, %s33
      %p37 = pneg %p31
      %p38 = scmp.eq.s32.totalorder %s22, 1
      %p39 = por %p37, %p38
      %p40 = scmp.ne.s32.totalorder %s32, %s35
      %p41 = scmp.eq.s32.totalorder %s22, 0
      %p42 = por %p40, %p41
      %p43 = scmp.ne.s32.totalorder %s32, %s35
      %p44 = scmp.eq.s32.totalorder %s27, 1
      %p45 = por %p43, %p44
      %p46 = scmp.ne.s32.totalorder %s35, %s36
      %p47 = scmp.eq.s32.totalorder %s27, 0
      %p48 = por %p46, %p47
      %p49 = scmp.ne.s32.totalorder %s35, %s36
      %p50 = scmp.eq.s32.totalorder %s28, 1
      %p51 = por %p49, %p50
      %p53 = scmp.ne.s32.totalorder %s36, %s52
      %p54 = scmp.eq.s32.totalorder %s28, 0
      %p55 = por %p53, %p54
      %s56 = ssub.s32 %s22, %s29
      %p57 = scmp.eq.s32.totalorder %s56, 0
      %s59 = sadd.s32 %s58, 1
      %s60 = scalar_select %p57, %s58, %s59
      %p63 = pneg %p57
      %p64 = scmp.eq.s32.totalorder %s22, 1
      %p65 = por %p63, %p64
      %p66 = scmp.ne.s32.totalorder %s58, %s61
      %p67 = scmp.eq.s32.totalorder %s22, 0
      %p68 = por %p66, %p67
      %p69 = scmp.ne.s32.totalorder %s58, %s61
      %p70 = scmp.eq.s32.totalorder %s27, 1
      %p71 = por %p69, %p70
      %p72 = scmp.ne.s32.totalorder %s61, %s62
      %p73 = scmp.eq.s32.totalorder %s27, 0
      %p74 = por %p72, %p73
      %p75 = scmp.ne.s32.totalorder %s61, %s62
      %p76 = scmp.eq.s32.totalorder %s28, 1
      %p77 = por %p75, %p76
      %p79 = scmp.ne.s32.totalorder %s62, %s78
      %p80 = scmp.eq.s32.totalorder %s28, 0
      %p81 = por %p79, %p80
      %s82 = ssub.s32 %s22, %s29
      %p83 = scmp.eq.s32.totalorder %s82, 0
      %s85 = sadd.s32 %s84, 1
      %s86 = scalar_select %p83, %s84, %s85
      %p89 = pneg %p83
      %p90 = scmp.eq.s32.totalorder %s22, 1
      %p91 = por %p89, %p90
      %p92 = scmp.ne.s32.totalorder %s84, %s87
      %p93 = scmp.eq.s32.totalorder %s22, 0
      %p94 = por %p92, %p93
      %p95 = scmp.ne.s32.totalorder %s84, %s87
      %p96 = scmp.eq.s32.totalorder %s27, 1
      %p97 = por %p95, %p96
      %p98 = scmp.ne.s32.totalorder %s87, %s88
      %p99 = scmp.eq.s32.totalorder %s27, 0
      %p100 = por %p98, %p99
      %p101 = scmp.ne.s32.totalorder %s87, %s88
      %p102 = scmp.eq.s32.totalorder %s28, 1
      %p103 = por %p101, %p102
      %p105 = scmp.ne.s32.totalorder %s88, %s104
      %p106 = scmp.eq.s32.totalorder %s28, 0
      %p107 = por %p105, %p106
      %s108 = ssub.s32 %s22, %s29
      %p109 = scmp.eq.s32.totalorder %s108, 0
      %s111 = sadd.s32 %s110, 1
      %s112 = scalar_select %p109, %s110, %s111
      %p115 = pneg %p109
      %p116 = scmp.eq.s32.totalorder %s22, 1
      %p117 = por %p115, %p116
      %p118 = scmp.ne.s32.totalorder %s110, %s113
      %p119 = scmp.eq.s32.totalorder %s22, 0
      %p120 = por %p118, %p119
      %p121 = scmp.ne.s32.totalorder %s110, %s113
      %p122 = scmp.eq.s32.totalorder %s27, 1
      %p123 = por %p121, %p122
      %p124 = scmp.ne.s32.totalorder %s113, %s114
      %p125 = scmp.eq.s32.totalorder %s27, 0
      %p126 = por %p124, %p125
      %p127 = scmp.ne.s32.totalorder %s113, %s114
      %p128 = scmp.eq.s32.totalorder %s28, 1
      %p129 = por %p127, %p128
      %p131 = scmp.ne.s32.totalorder %s114, %s130
      %p132 = scmp.eq.s32.totalorder %s28, 0
      %p133 = por %p131, %p132
      %s134 = ssub.s32 %s22, %s29
      %p135 = scmp.eq.s32.totalorder %s134, 0
      %s137 = sadd.s32 %s136, 1
      %s138 = scalar_select %p135, %s136, %s137
      %p141 = pneg %p135
      %p142 = scmp.eq.s32.totalorder %s22, 1
      %p143 = por %p141, %p142
      %p144 = scmp.ne.s32.totalorder %s136, %s139
      %p145 = scmp.eq.s32.totalorder %s22, 0
      %p146 = por %p144, %p145
      %p147 = scmp.ne.s32.totalorder %s136, %s139
      %p148 = scmp.eq.s32.totalorder %s27, 1
      %p149 = por %p147, %p148
      %p150 = scmp.ne.s32.totalorder %s139, %s140
      %p151 = scmp.eq.s32.totalorder %s27, 0
      %p152 = por %p150, %p151
      %p153 = scmp.ne.s32.totalorder %s139, %s140
      %p154 = scmp.eq.s32.totalorder %s28, 1
      %p155 = por %p153, %p154
      %p157 = scmp.ne.s32.totalorder %s140, %s156
      %p158 = scmp.eq.s32.totalorder %s28, 0
      %p159 = por %p157, %p158
      %p160 = scmp.le.s32.totalorder 1, %s22
      %p161 = scmp.lt.s32.totalorder %s22, 3
      %p162 = pnand %p160, %p161
      %p163 = pneg %p162
      // Predicated region
      $region9: #{tpu_custom_call.1} parent=5 // pred_check
        _
      $region10: #{tpu_custom_call.1} parent=5 // pred_check_branch
        %165 = sbr.rel (%p162) target = $region12
      $region11: #{tpu_custom_call.1} parent=5 // pred_region
        %s166 = ssub.s32 %s22, 1
      $region12: #{tpu_custom_call.1} parent=5 // pred_fallthru
        _
      %p167 = scmp.lt.s32.totalorder %s22, 2
      // Predicated region
      $region13: #{tpu_custom_call.1} parent=5 // pred_check
        %p168 = pneg %p167
      $region14: #{tpu_custom_call.1} parent=5 // pred_check_branch
        %170 = sbr.rel (%p168) target = $region16
      $region15: #{tpu_custom_call.1} parent=5 // pred_region
        // Predicated region
        $region17: #{tpu_custom_call.1} parent=15 // pred_check
          %p171 = pneg %p42
        $region18: #{tpu_custom_call.1} parent=15 // pred_check_branch
          %173 = sbr.rel (%p171) target = $region20
        $region19: #{tpu_custom_call.1} parent=15 // pred_region
          %s174 = sand.u32 %s32, 1
          %s175 = scalar_lea.sflag [#allocation3], %s174
          %s176 = sand.u32 %s32, 1
          %s177 = smul.addr %s176, 8
          %s178 = scalar_lea.vmem [#allocation2], %s177
          %s180 = ssub.s32 128, 128
          %181 = vsyncadd %s175, %s180
          %s182 = smul.addr %s22, 128
          %s183 = scalar_lea.hbm %s0, %s182
          %s185 = sshll.u32 %s178, 4
          %s186 = int_to_ptr.vmem [resolvable:$true] %s185
          %188 = dma.hbm_to_vmem [thread:$0]  %s183, 128, %s186, %s175
        $region20: #{tpu_custom_call.1} parent=15 // pred_fallthru
          _
        // Predicated region
        $region21: #{tpu_custom_call.1} parent=15 // pred_check
          %p189 = pneg %p68
        $region22: #{tpu_custom_call.1} parent=15 // pred_check_branch
          %191 = sbr.rel (%p189) target = $region24
        $region23: #{tpu_custom_call.1} parent=15 // pred_region
          %s192 = sand.u32 %s22, 1
          %s193 = scalar_lea.sflag [#allocation6], %s192
          %s194 = sand.u32 %s58, 1
          %s195 = smul.addr %s194, 8
          %s196 = scalar_lea.vmem [#allocation5], %s195
          %s198 = ssub.s32 128, 128
          %199 = vsyncadd %s193, %s198
          %s200 = smul.addr %s22, 128
          %s201 = scalar_lea.hbm %s1, %s200
          %s203 = sshll.u32 %s196, 4
          %s204 = int_to_ptr.vmem [resolvable:$true] %s203
          %206 = dma.hbm_to_vmem [thread:$0]  %s201, 128, %s204, %s193
        $region24: #{tpu_custom_call.1} parent=15 // pred_fallthru
          _
        // Predicated region
        $region25: #{tpu_custom_call.1} parent=15 // pred_check
          %p207 = pneg %p94
        $region26: #{tpu_custom_call.1} parent=15 // pred_check_branch
          %209 = sbr.rel (%p207) target = $region28
        $region27: #{tpu_custom_call.1} parent=15 // pred_region
          %s210 = sand.u32 %s22, 1
          %s211 = scalar_lea.sflag [#allocation6], %s210
          %s212 = sand.u32 %s84, 1
          %s213 = smul.addr %s212, 16
          %s214 = scalar_lea.vmem [#allocation7], %s213
          %s216 = ssub.s32 256, 256
          %217 = vsyncadd %s211, %s216
          %s218 = smul.addr %s22, 2
          %s219 = smul.addr %s218, 128
          %s220 = scalar_lea.hbm %s2, %s219
          %s222 = sshll.u32 %s214, 4
          %s223 = int_to_ptr.vmem [resolvable:$true] %s222
          %225 = dma.hbm_to_vmem [thread:$0]  %s220, 256, %s223, %s211
        $region28: #{tpu_custom_call.1} parent=15 // pred_fallthru
          _
        // Predicated region
        $region29: #{tpu_custom_call.1} parent=15 // pred_check
          %p226 = pneg %p120
        $region30: #{tpu_custom_call.1} parent=15 // pred_check_branch
          %228 = sbr.rel (%p226) target = $region32
        $region31: #{tpu_custom_call.1} parent=15 // pred_region
          %s229 = sand.u32 %s110, 1
          %s230 = scalar_lea.sflag [#allocation9], %s229
          %s231 = sand.u32 %s110, 1
          %s232 = smul.addr %s231, 16
          %s233 = scalar_lea.vmem [#allocation8], %s232
          %s235 = ssub.s32 256, 256
          %236 = vsyncadd %s230, %s235
          %s237 = smul.addr %s22, 2
          %s238 = smul.addr %s237, 128
          %s239 = scalar_lea.hbm %s3, %s238
          %s241 = sshll.u32 %s233, 4
          %s242 = int_to_ptr.vmem [resolvable:$true] %s241
          %244 = dma.hbm_to_vmem [thread:$0]  %s239, 256, %s242, %s230
        $region32: #{tpu_custom_call.1} parent=15 // pred_fallthru
          _
      $region16: #{tpu_custom_call.1} parent=5 // pred_fallthru
        _
      %p245 = scmp.le.s32.totalorder 1, %s22
      %p246 = scmp.lt.s32.totalorder %s22, 3
      %p247 = pnand %p245, %p246
      %p248 = pneg %p247
      // Predicated region
      $region33: #{tpu_custom_call.1} parent=5 // pred_check
        _
      $region34: #{tpu_custom_call.1} parent=5 // pred_check_branch
        %250 = sbr.rel (%p247) target = $region36
      $region35: #{tpu_custom_call.1} parent=5 // pred_region
        %s251 = ssub.s32 %s22, 1
        %s252 = sand.u32 %s35, 1
        %s253 = scalar_lea.sflag [#allocation3], %s252
        %s254 = sand.u32 %s35, 1
        %s255 = smul.addr %s254, 8
        %s256 = scalar_lea.vmem [#allocation2], %s255
        // Predicated region
        $region37: #{tpu_custom_call.1} parent=35 // pred_check
          %p257 = pneg %p48
        $region38: #{tpu_custom_call.1} parent=35 // pred_check_branch
          %259 = sbr.rel (%p257) target = $region40
        $region39: #{tpu_custom_call.1} parent=35 // pred_region
          %260 = dma.done %s253, 128
        $region40: #{tpu_custom_call.1} parent=35 // pred_fallthru
          _
        %s261 = sand.u32 %s27, 1
        %s262 = scalar_lea.sflag [#allocation6], %s261
        %s263 = sand.u32 %s61, 1
        %s264 = smul.addr %s263, 8
        %s265 = scalar_lea.vmem [#allocation5], %s264
        // Predicated region
        $region41: #{tpu_custom_call.1} parent=35 // pred_check
          %p266 = pneg %p74
        $region42: #{tpu_custom_call.1} parent=35 // pred_check_branch
          %268 = sbr.rel (%p266) target = $region44
        $region43: #{tpu_custom_call.1} parent=35 // pred_region
          %269 = dma.done %s262, 128
        $region44: #{tpu_custom_call.1} parent=35 // pred_fallthru
          _
        %s270 = sand.u32 %s27, 1
        %s271 = scalar_lea.sflag [#allocation6], %s270
        %s272 = sand.u32 %s87, 1
        %s273 = smul.addr %s272, 16
        %s274 = scalar_lea.vmem [#allocation7], %s273
        // Predicated region
        $region45: #{tpu_custom_call.1} parent=35 // pred_check
          %p275 = pneg %p100
        $region46: #{tpu_custom_call.1} parent=35 // pred_check_branch
          %277 = sbr.rel (%p275) target = $region48
        $region47: #{tpu_custom_call.1} parent=35 // pred_region
          %278 = dma.done %s271, 256
        $region48: #{tpu_custom_call.1} parent=35 // pred_fallthru
          _
        %s279 = sand.u32 %s113, 1
        %s280 = scalar_lea.sflag [#allocation9], %s279
        %s281 = sand.u32 %s113, 1
        %s282 = smul.addr %s281, 16
        %s283 = scalar_lea.vmem [#allocation8], %s282
        // Predicated region
        $region49: #{tpu_custom_call.1} parent=35 // pred_check
          %p284 = pneg %p126
        $region50: #{tpu_custom_call.1} parent=35 // pred_check_branch
          %286 = sbr.rel (%p284) target = $region52
        $region51: #{tpu_custom_call.1} parent=35 // pred_region
          %287 = dma.done %s280, 256
        $region52: #{tpu_custom_call.1} parent=35 // pred_fallthru
          _
        %s288 = sand.u32 %s35, 1
        %s289 = scalar_lea.sflag [#allocation3], %s288
        %s290 = sand.u32 %s35, 1
        %s291 = smul.addr %s290, 8
        %s292 = scalar_lea.vmem [#allocation2], %s291
        %p293 = pneg %p48
        %p294 = pneg %p45
        %s295 = sand.u32 %s27, 1
        %s296 = scalar_lea.sflag [#allocation6], %s295
        %s297 = sand.u32 %s61, 1
        %s298 = smul.addr %s297, 8
        %s299 = scalar_lea.vmem [#allocation5], %s298
        %p300 = pneg %p74
        %p301 = pneg %p71
        %s302 = sand.u32 %s27, 1
        %s303 = scalar_lea.sflag [#allocation6], %s302
        %s304 = sand.u32 %s87, 1
        %s305 = smul.addr %s304, 16
        %s306 = scalar_lea.vmem [#allocation7], %s305
        %p307 = pneg %p100
        %p308 = pneg %p97
        %s309 = sand.u32 %s113, 1
        %s310 = scalar_lea.sflag [#allocation9], %s309
        %s311 = sand.u32 %s113, 1
        %s312 = smul.addr %s311, 16
        %s313 = scalar_lea.vmem [#allocation8], %s312
        %p314 = pneg %p126
        %p315 = pneg %p123
        %p316 = pneg %p152
        %p317 = pneg %p149
        %s318 = sand.u32 %s139, 1
        %s319 = scalar_lea.sflag [#allocation4], %s318
        %s320 = sand.u32 %s139, 1
        %s321 = smul.addr %s320, 16
        %s322 = scalar_lea.vmem [#allocation10], %s321
        %p323 = scmp.ne.s32.totalorder %s27, 1
        // Predicated region
        $region53: #{tpu_custom_call.1} parent=35 // pred_check
          %p324 = pneg %p323
        $region54: #{tpu_custom_call.1} parent=35 // pred_check_branch
          %326 = sbr.rel (%p324) target = $region56
        $region55: #{tpu_custom_call.1} parent=35 // pred_region
          %v327 = vld [vmem:[%s274] sm:$0xff]
          %v328 = vld [vmem:[%s274 + $0x8] sm:$0xff]
          %v329 = vld [vmem:[%s283] sm:$0xff]
          %v330 = vld [vmem:[%s283 + $0x8] sm:$0xff]
          %v331 = vsub.f32 %v327, %v329
          %v332 = vsub.f32 %v328, %v330
          %v333 = vmul.f32 %v331, %v331
          %v334 = vmul.f32 %v332, %v332
          %v335 = vld [vmem:[%s256] sm:$0xff]
          %v336 = vmul.f32 %v335, %v335
          %v337 = vld [vmem:[%s265] sm:$0xff]
          %v338 = vmul.f32 %v337, 1.442695
          %v339 = vpow.pop %v338
          %v340 = vadd.f32 %v336, %v339
          %v341 = vsub.f32 %v340, %v337
          %v342 = vsub.f32 %v341, 1.0
          %v343 = vadd.f32 %v333, 0.0
          %v344 = vadd.f32 %v334, 0.0
          %v345 = vcombine.high %v343, 0.0
          %v347 = vunpack.c.l.s4 1983009808
          %v348 = vunpack.c.0.s8 %v347
          %v349 = vlaneseq
          %v350 = vshrl.u32 %v349, 7
          %v351 = vsub.s32 %v348, %v350
          %v352 = vrot.slane %v343, %v351
          %v354 = vunpack.c.l.s4 1983009808
          %v355 = vunpack.c.0.s8 %v354
          %v356 = vlaneseq
          %v357 = vshrl.u32 %v356, 7
          %v358 = vsub.s32 %v355, %v357
          %v359 = vrot.slane %v345, %v358
          %v360 = vcombine.high %v344, 0.0
          %v362 = vunpack.c.l.s4 1983009808
          %v363 = vunpack.c.0.s8 %v362
          %v364 = vlaneseq
          %v365 = vshrl.u32 %v364, 7
          %v366 = vsub.s32 %v363, %v365
          %v367 = vrot.slane %v344, %v366
          %v369 = vunpack.c.l.s4 1983009808
          %v370 = vunpack.c.0.s8 %v369
          %v371 = vlaneseq
          %v372 = vshrl.u32 %v371, 7
          %v373 = vsub.s32 %v370, %v372
          %v374 = vrot.slane %v360, %v373
          %v375 = vcombine.low %v352, %v367
          %v376 = vcombine.high %v352, %v367
          %v378 = vunpack.c.l.s4 1934713408
          %v379 = vunpack.c.0.s8 %v378
          %v380 = vlaneseq
          %v381 = vshrl.u32 %v380, 7
          %v382 = vsub.s32 %v379, %v381
          %v383 = vrot.slane %v375, %v382
          %v385 = vunpack.c.l.s4 1934713408
          %v386 = vunpack.c.0.s8 %v385
          %v387 = vlaneseq
          %v388 = vshrl.u32 %v387, 7
          %v389 = vsub.s32 %v386, %v388
          %v390 = vrot.slane %v376, %v389
          %v391 = vcombine.low %v359, %v374
          %v392 = vcombine.high %v359, %v374
          %v394 = vunpack.c.l.s4 1934713408
          %v395 = vunpack.c.0.s8 %v394
          %v396 = vlaneseq
          %v397 = vshrl.u32 %v396, 7
          %v398 = vsub.s32 %v395, %v397
          %v399 = vrot.slane %v391, %v398
          %v401 = vunpack.c.l.s4 1934713408
          %v402 = vunpack.c.0.s8 %v401
          %v403 = vlaneseq
          %v404 = vshrl.u32 %v403, 7
          %v405 = vsub.s32 %v402, %v404
          %v406 = vrot.slane %v392, %v405
          %v407 = vcombine.high %v383, 0.0
          %v408 = vcombine.high %v390, 0.0
          %v409 = vcombine.high %v399, 0.0
          %v410 = vcombine.high %v406, 0.0
          %vm411 = vcmask 1041408
          %v412 = vsel %vm411, %v383, 0.0
          %v413 = vrot.slane %v412, 4
          %v414 = vadd.f32 %v412, %v413
          %v415 = vrot.slane %v414, 2
          %v416 = vadd.f32 %v414, %v415
          %v417 = vrot.slane %v416, 1
          %v418 = vadd.f32 %v416, %v417
          %v419 = vsel %vm411, %v407, 0.0
          %v420 = vrot.slane %v419, 4
          %v421 = vadd.f32 %v419, %v420
          %v422 = vrot.slane %v421, 2
          %v423 = vadd.f32 %v421, %v422
          %v424 = vrot.slane %v423, 1
          %v425 = vadd.f32 %v423, %v424
          %v426 = vsel %vm411, %v390, 0.0
          %v427 = vrot.slane %v426, 4
          %v428 = vadd.f32 %v426, %v427
          %v429 = vrot.slane %v428, 2
          %v430 = vadd.f32 %v428, %v429
          %v431 = vrot.slane %v430, 1
          %v432 = vadd.f32 %v430, %v431
          %v433 = vsel %vm411, %v408, 0.0
          %v434 = vrot.slane %v433, 4
          %v435 = vadd.f32 %v433, %v434
          %v436 = vrot.slane %v435, 2
          %v437 = vadd.f32 %v435, %v436
          %v438 = vrot.slane %v437, 1
          %v439 = vadd.f32 %v437, %v438
          %v440 = vsel %vm411, %v399, 0.0
          %v441 = vrot.slane %v440, 4
          %v442 = vadd.f32 %v440, %v441
          %v443 = vrot.slane %v442, 2
          %v444 = vadd.f32 %v442, %v443
          %v445 = vrot.slane %v444, 1
          %v446 = vadd.f32 %v444, %v445
          %v447 = vsel %vm411, %v409, 0.0
          %v448 = vrot.slane %v447, 4
          %v449 = vadd.f32 %v447, %v448
          %v450 = vrot.slane %v449, 2
          %v451 = vadd.f32 %v449, %v450
          %v452 = vrot.slane %v451, 1
          %v453 = vadd.f32 %v451, %v452
          %v454 = vsel %vm411, %v406, 0.0
          %v455 = vrot.slane %v454, 4
          %v456 = vadd.f32 %v454, %v455
          %v457 = vrot.slane %v456, 2
          %v458 = vadd.f32 %v456, %v457
          %v459 = vrot.slane %v458, 1
          %v460 = vadd.f32 %v458, %v459
          %v461 = vsel %vm411, %v410, 0.0
          %v462 = vrot.slane %v461, 4
          %v463 = vadd.f32 %v461, %v462
          %v464 = vrot.slane %v463, 2
          %v465 = vadd.f32 %v463, %v464
          %v466 = vrot.slane %v465, 1
          %v467 = vadd.f32 %v465, %v466
          %v468 = vadd.f32 %v342, 0.0
          %vm469 = vcmask 261120
          %v470 = vsel %vm469, %v468, 0.0
          %471 = vadd.xlane.f32.xlu0 %v470
          %v472 = vpop.xlane.xlu0 %471
          %v473 = vrot.slane %v472, 4
          %v474 = vadd.f32 %v472, %v473
          %v475 = vrot.slane %v474, 2
          %v476 = vadd.f32 %v474, %v475
          %v477 = vrot.slane %v476, 1
          %v478 = vadd.f32 %v476, %v477
          %s479 = vtos %v478
          %v480 = vlaneseq
          %v481 = vshrl.u32 %v480, 7
          %v482 = vlaneseq
          %v483 = vand.u32 %v482, 127
          %vm484 = vcmp.eq.s32.totalorder %v481, 0
          %vm485 = vcmp.eq.s32.totalorder %v483, 0
          %vm486 = vmand %vm484, %vm485
          %v487 = vstv %s479
          %v488 = vsel %vm486, %v487, 0.0
          %v489 = vmul.f32 %v488, 0.5
          %vm498 = vcmask 1041409
          %v499 = vsel %vm498, %v425, %v418
          %vm500 = vcmask 1042434
          %v501 = vsel %vm500, %v432, %v499
          %vm502 = vcmask 1043459
          %v503 = vsel %vm502, %v439, %v501
          %vm504 = vcmask 1044484
          %v505 = vsel %vm504, %v446, %v503
          %vm506 = vcmask 1045509
          %v507 = vsel %vm506, %v453, %v505
          %vm508 = vcmask 1046534
          %v509 = vsel %vm508, %v460, %v507
          %vm510 = vcmask 1047559
          %v511 = vsel %vm510, %v467, %v509
          %513 = vst [vmem:[%s322] sm:$0xff] %v511
          %514 = vst [vmem:[%s322 + $0x8] sm:$0xff] %v489
        $region56: #{tpu_custom_call.1} parent=35 // pred_fallthru
          _
        %p515 = scmp.eq.s32.totalorder %s27, 1
        // Predicated region
        $region57: #{tpu_custom_call.1} parent=35 // pred_check
          %p516 = pneg %p515
        $region58: #{tpu_custom_call.1} parent=35 // pred_check_branch
          %518 = sbr.rel (%p516) target = $region60
        $region59: #{tpu_custom_call.1} parent=35 // pred_region
          %v519 = vlaneseq
          %v520 = vshrl.u32 %v519, 7
          %s521 = smul.u32 %s27, 8
          %v522 = vstv %s521
          %v523 = vadd.s32 %v522, %v520
          %vm524 = vcmp.lt.s32.totalorder %v523, 12
          %v525 = vld [vmem:[%s274] sm:$0xff]
          %v526 = vld [vmem:[%s274 + $0x8] sm:$0xff]
          %v527 = vld [vmem:[%s283] sm:$0xff]
          %v528 = vld [vmem:[%s283 + $0x8] sm:$0xff]
          %v529 = vsub.f32 %v525, %v527
          %v530 = vsub.f32 %v526, %v528
          %v531 = vmul.f32 %v529, %v529
          %v532 = vmul.f32 %v530, %v530
          %v533 = vld [vmem:[%s256] sm:$0xff]
          %v534 = vmul.f32 %v533, %v533
          %v535 = vld [vmem:[%s265] sm:$0xff]
          %v536 = vmul.f32 %v535, 1.442695
          %v537 = vpow.pop %v536
          %v538 = vadd.f32 %v534, %v537
          %v539 = vsub.f32 %v538, %v535
          %v540 = vsub.f32 %v539, 1.0
          %v541 = vsel %vm524, 1, 0
          %vm542 = vcmp.eq.s32.totalorder %v541, 1
          %v543 = vsel %vm542, %v531, 0.0
          %v544 = vsel %vm542, %v532, 0.0
          %v545 = vsel %vm542, %v540, 0.0
          %v546 = vadd.f32 %v543, 0.0
          %v547 = vadd.f32 %v544, 0.0
          %v548 = vcombine.high %v546, 0.0
          %v550 = vunpack.c.l.s4 1983009808
          %v551 = vunpack.c.0.s8 %v550
          %v552 = vlaneseq
          %v553 = vshrl.u32 %v552, 7
          %v554 = vsub.s32 %v551, %v553
          %v555 = vrot.slane %v546, %v554
          %v557 = vunpack.c.l.s4 1983009808
          %v558 = vunpack.c.0.s8 %v557
          %v559 = vlaneseq
          %v560 = vshrl.u32 %v559, 7
          %v561 = vsub.s32 %v558, %v560
          %v562 = vrot.slane %v548, %v561
          %v563 = vcombine.high %v547, 0.0
          %v565 = vunpack.c.l.s4 1983009808
          %v566 = vunpack.c.0.s8 %v565
          %v567 = vlaneseq
          %v568 = vshrl.u32 %v567, 7
          %v569 = vsub.s32 %v566, %v568
          %v570 = vrot.slane %v547, %v569
          %v572 = vunpack.c.l.s4 1983009808
          %v573 = vunpack.c.0.s8 %v572
          %v574 = vlaneseq
          %v575 = vshrl.u32 %v574, 7
          %v576 = vsub.s32 %v573, %v575
          %v577 = vrot.slane %v563, %v576
          %v578 = vcombine.low %v555, %v570
          %v579 = vcombine.high %v555, %v570
          %v581 = vunpack.c.l.s4 1934713408
          %v582 = vunpack.c.0.s8 %v581
          %v583 = vlaneseq
          %v584 = vshrl.u32 %v583, 7
          %v585 = vsub.s32 %v582, %v584
          %v586 = vrot.slane %v578, %v585
          %v588 = vunpack.c.l.s4 1934713408
          %v589 = vunpack.c.0.s8 %v588
          %v590 = vlaneseq
          %v591 = vshrl.u32 %v590, 7
          %v592 = vsub.s32 %v589, %v591
          %v593 = vrot.slane %v579, %v592
          %v594 = vcombine.low %v562, %v577
          %v595 = vcombine.high %v562, %v577
          %v597 = vunpack.c.l.s4 1934713408
          %v598 = vunpack.c.0.s8 %v597
          %v599 = vlaneseq
          %v600 = vshrl.u32 %v599, 7
          %v601 = vsub.s32 %v598, %v600
          %v602 = vrot.slane %v594, %v601
          %v604 = vunpack.c.l.s4 1934713408
          %v605 = vunpack.c.0.s8 %v604
          %v606 = vlaneseq
          %v607 = vshrl.u32 %v606, 7
          %v608 = vsub.s32 %v605, %v607
          %v609 = vrot.slane %v595, %v608
          %v610 = vcombine.high %v586, 0.0
          %v611 = vcombine.high %v593, 0.0
          %v612 = vcombine.high %v602, 0.0
          %v613 = vcombine.high %v609, 0.0
          %vm614 = vcmask 1041408
          %v615 = vsel %vm614, %v586, 0.0
          %v616 = vrot.slane %v615, 4
          %v617 = vadd.f32 %v615, %v616
          %v618 = vrot.slane %v617, 2
          %v619 = vadd.f32 %v617, %v618
          %v620 = vrot.slane %v619, 1
          %v621 = vadd.f32 %v619, %v620
          %v622 = vsel %vm614, %v610, 0.0
          %v623 = vrot.slane %v622, 4
          %v624 = vadd.f32 %v622, %v623
          %v625 = vrot.slane %v624, 2
          %v626 = vadd.f32 %v624, %v625
          %v627 = vrot.slane %v626, 1
          %v628 = vadd.f32 %v626, %v627
          %v629 = vsel %vm614, %v593, 0.0
          %v630 = vrot.slane %v629, 4
          %v631 = vadd.f32 %v629, %v630
          %v632 = vrot.slane %v631, 2
          %v633 = vadd.f32 %v631, %v632
          %v634 = vrot.slane %v633, 1
          %v635 = vadd.f32 %v633, %v634
          %v636 = vsel %vm614, %v611, 0.0
          %v637 = vrot.slane %v636, 4
          %v638 = vadd.f32 %v636, %v637
          %v639 = vrot.slane %v638, 2
          %v640 = vadd.f32 %v638, %v639
          %v641 = vrot.slane %v640, 1
          %v642 = vadd.f32 %v640, %v641
          %v643 = vsel %vm614, %v602, 0.0
          %v644 = vrot.slane %v643, 4
          %v645 = vadd.f32 %v643, %v644
          %v646 = vrot.slane %v645, 2
          %v647 = vadd.f32 %v645, %v646
          %v648 = vrot.slane %v647, 1
          %v649 = vadd.f32 %v647, %v648
          %v650 = vsel %vm614, %v612, 0.0
          %v651 = vrot.slane %v650, 4
          %v652 = vadd.f32 %v650, %v651
          %v653 = vrot.slane %v652, 2
          %v654 = vadd.f32 %v652, %v653
          %v655 = vrot.slane %v654, 1
          %v656 = vadd.f32 %v654, %v655
          %v657 = vsel %vm614, %v609, 0.0
          %v658 = vrot.slane %v657, 4
          %v659 = vadd.f32 %v657, %v658
          %v660 = vrot.slane %v659, 2
          %v661 = vadd.f32 %v659, %v660
          %v662 = vrot.slane %v661, 1
          %v663 = vadd.f32 %v661, %v662
          %v664 = vsel %vm614, %v613, 0.0
          %v665 = vrot.slane %v664, 4
          %v666 = vadd.f32 %v664, %v665
          %v667 = vrot.slane %v666, 2
          %v668 = vadd.f32 %v666, %v667
          %v669 = vrot.slane %v668, 1
          %v670 = vadd.f32 %v668, %v669
          %v671 = vadd.f32 %v545, 0.0
          %vm672 = vcmask 261120
          %v673 = vsel %vm672, %v671, 0.0
          %674 = vadd.xlane.f32.xlu0 %v673
          %v675 = vpop.xlane.xlu0 %674
          %v676 = vrot.slane %v675, 4
          %v677 = vadd.f32 %v675, %v676
          %v678 = vrot.slane %v677, 2
          %v679 = vadd.f32 %v677, %v678
          %v680 = vrot.slane %v679, 1
          %v681 = vadd.f32 %v679, %v680
          %s682 = vtos %v681
          %v683 = vlaneseq
          %v684 = vand.u32 %v683, 127
          %vm685 = vcmp.eq.s32.totalorder %v520, 0
          %vm686 = vcmp.eq.s32.totalorder %v684, 0
          %vm687 = vmand %vm685, %vm686
          %v688 = vstv %s682
          %v689 = vsel %vm687, %v688, 0.0
          %v690 = vmul.f32 %v689, 0.5
          %vm699 = vcmask 1041409
          %v700 = vsel %vm699, %v628, %v621
          %vm701 = vcmask 1042434
          %v702 = vsel %vm701, %v635, %v700
          %vm703 = vcmask 1043459
          %v704 = vsel %vm703, %v642, %v702
          %vm705 = vcmask 1044484
          %v706 = vsel %vm705, %v649, %v704
          %vm707 = vcmask 1045509
          %v708 = vsel %vm707, %v656, %v706
          %vm709 = vcmask 1046534
          %v710 = vsel %vm709, %v663, %v708
          %vm711 = vcmask 1047559
          %v712 = vsel %vm711, %v670, %v710
          %714 = vst [vmem:[%s322] sm:$0xff] %v712
          %715 = vst [vmem:[%s322 + $0x8] sm:$0xff] %v690
        $region60: #{tpu_custom_call.1} parent=35 // pred_fallthru
          _
        %s716 = sand.u32 %s139, 1
        %s717 = scalar_lea.sflag [#allocation4], %s716
        %s718 = sand.u32 %s139, 1
        %s719 = smul.addr %s718, 16
        %s720 = scalar_lea.vmem [#allocation10], %s719
        // Predicated region
        $region61: #{tpu_custom_call.1} parent=35 // pred_check
          %p721 = pneg %p149
        $region62: #{tpu_custom_call.1} parent=35 // pred_check_branch
          %723 = sbr.rel (%p721) target = $region64
        $region63: #{tpu_custom_call.1} parent=35 // pred_region
          %s725 = ssub.s32 256, 256
          %726 = vsyncadd %s717, %s725
          %s727 = smul.addr %s27, 2
          %s728 = smul.addr %s727, 128
          %s729 = scalar_lea.hbm %s4, %s728
          %s730 = sshll.u32 %s720, 4
          %s731 = int_to_ptr.vmem [resolvable:$true] %s730
          %736 = dma.vmem_to_hbm [thread:$0]  %s731, 256, %s729, %s717, 128, 128, 8
        $region64: #{tpu_custom_call.1} parent=35 // pred_fallthru
          _
      $region36: #{tpu_custom_call.1} parent=5 // pred_fallthru
        _
      %p737 = scmp.le.s32.totalorder 2, %s22
      // Predicated region
      $region65: #{tpu_custom_call.1} parent=5 // pred_check
        %p738 = pneg %p737
      $region66: #{tpu_custom_call.1} parent=5 // pred_check_branch
        %740 = sbr.rel (%p738) target = $region68
      $region67: #{tpu_custom_call.1} parent=5 // pred_region
        %s741 = ssub.s32 %s22, 2
        // Predicated region
        $region69: #{tpu_custom_call.1} parent=67 // pred_check
          %p742 = pneg %p155
        $region70: #{tpu_custom_call.1} parent=67 // pred_check_branch
          %744 = sbr.rel (%p742) target = $region72
        $region71: #{tpu_custom_call.1} parent=67 // pred_region
          %s745 = sand.u32 %s140, 1
          %s746 = scalar_lea.sflag [#allocation4], %s745
          %s747 = sand.u32 %s140, 1
          %s748 = smul.addr %s747, 16
          %s749 = scalar_lea.vmem [#allocation10], %s748
          %750 = dma.done %s746, 256
        $region72: #{tpu_custom_call.1} parent=67 // pred_fallthru
          _
      $region68: #{tpu_custom_call.1} parent=5 // pred_fallthru
        _
    $region6: #{tpu_custom_call.1} parent=1 // loop_footer
      %s26 = sadd.s32 1, %s22
    $region7: #{tpu_custom_call.1} parent=1 // loop_footer_branch
      %21 = sbr.rel target = $region3
    $region8: #{tpu_custom_call.1} parent=1 // loop_exit
      _
    %751 = vsyncpa [#allocation3], 1
    %s752 = scalar_lea.sflag [#allocation3], 1
    %753 = vsyncpa %s752, 1
    %754 = vsyncpa [#allocation6], 1
    %s755 = scalar_lea.sflag [#allocation6], 1
    %756 = vsyncpa %s755, 1
    %757 = vsyncpa [#allocation9], 1
    %s758 = scalar_lea.sflag [#allocation9], 1
    %759 = vsyncpa %s758, 1
    %760 = vsyncpa [#allocation4], 1
    %s761 = scalar_lea.sflag [#allocation4], 1
    %762 = vsyncpa %s761, 1

</llo_original>
